<compile_context>
chip_gen: v7x
topology: tpu7x:2x2x1
jax: 0.10.0
libtpu: 0.0.40
codegen_flags: <defaults>
</compile_context>

<pallas_src>
import math
import functools

import jax
import jax.numpy as jnp
from jax.experimental import pallas as pl
from jax.experimental.pallas import tpu as pltpu


def _round_up(x, m):
    return ((x + m - 1) // m) * m


def _mlp_kernel(x_ref, w1_ref, b1_ref, g_ref, beta_ref, w2_ref, b2_ref, o_ref,
                *, hidden_dim, eps):
    # x tile and weights go to the MXU in the weights' (bf16) dtype with f32
    # accumulation; all elementwise math (GELU / LayerNorm) stays in f32.
    x = x_ref[...]                                   # [TM, in_p]
    w1 = w1_ref[...]                                 # [in_p, hid_p]  (bf16)
    w2 = w2_ref[...]                                 # [hid_p, out_p] (bf16)

    # Linear 1 (MXU, bf16 x bf16 -> f32 accumulate)
    h = jnp.dot(x.astype(w1.dtype), w1, preferred_element_type=jnp.float32)
    h = h + b1_ref[...].astype(jnp.float32)          # [1, hid_p] implicit bcast

    # Exact GELU (erf form == PyTorch nn.GELU() default).
    # Padded hidden columns stay exactly 0 (zero w1 cols, zero b1, GELU(0)=0).
    h = 0.5 * h * (1.0 + jax.lax.erf(h * (1.0 / math.sqrt(2.0))))

    # LayerNorm over the *true* hidden_dim (padding-aware: padded cols are 0,
    # so plain sums over the padded axis equal sums over the real columns).
    inv_n = 1.0 / float(hidden_dim)
    mean = jnp.sum(h, axis=-1, keepdims=True) * inv_n
    var = jnp.sum(h * h, axis=-1, keepdims=True) * inv_n - mean * mean
    var = jnp.maximum(var, 0.0)
    hn = (h - mean) * jax.lax.rsqrt(var + eps)
    hn = hn * g_ref[...].astype(jnp.float32) + beta_ref[...].astype(jnp.float32)
    # Padded hidden columns of hn may be nonzero, but padded rows of w2 are 0,
    # so they contribute nothing to the second matmul.

    # Linear 2 (MXU)
    out = jnp.dot(hn.astype(w2.dtype), w2, preferred_element_type=jnp.float32)
    out = out + b2_ref[...].astype(jnp.float32)
    o_ref[...] = out.astype(o_ref.dtype)


def image_proj_model_f(x, params, *, row_tile=512, mxu_dtype=jnp.bfloat16,
                       eps=1e-5):
    """x: [B, S, in_dim] -> [B, S, out_dim]."""
    w1, b1, gamma, beta, w2, b2 = params
    B, S, in_dim = x.shape
    hidden_dim = w1.shape[1]
    out_dim = w2.shape[1]
    rows = B * S

    # Lane-dense feature dims (multiples of 128).
    in_p = _round_up(in_dim, 128)
    hid_p = _round_up(hidden_dim, 128)
    out_p = _round_up(out_dim, 128)

    # Row tile: multiple of 8 (f32 sublanes), clamped to the problem size;
    # rows are zero-padded up to a tile multiple (no divisibility assert).
    tm = _round_up(min(int(row_tile), _round_up(rows, 8)), 8)
    rows_p = _round_up(rows, tm)
    grid = (rows_p // tm,)

    # Pad activations and parameters with zeros (padding is mathematically
    # inert: see kernel comments).
    x2 = jnp.pad(x.reshape(rows, in_dim),
                 ((0, rows_p - rows), (0, in_p - in_dim)))
    w1_p = jnp.pad(w1, ((0, in_p - in_dim), (0, hid_p - hidden_dim))).astype(mxu_dtype)
    w2_p = jnp.pad(w2, ((0, hid_p - hidden_dim), (0, out_p - out_dim))).astype(mxu_dtype)
    b1_p = jnp.pad(b1, (0, hid_p - hidden_dim)).reshape(1, hid_p).astype(jnp.float32)
    g_p = jnp.pad(gamma, (0, hid_p - hidden_dim)).reshape(1, hid_p).astype(jnp.float32)
    be_p = jnp.pad(beta, (0, hid_p - hidden_dim)).reshape(1, hid_p).astype(jnp.float32)
    b2_p = jnp.pad(b2, (0, out_p - out_dim)).reshape(1, out_p).astype(jnp.float32)

    # Rough VMEM budget: double-buffered x/out tiles + weights (constant
    # index_map -> fetched once) + live f32 activation tile; 2x headroom,
    # capped at 64 MiB (v7x physical VMEM per TensorCore).
    itm_x = jnp.dtype(x.dtype).itemsize
    itm_w = jnp.dtype(mxu_dtype).itemsize
    est = (2 * tm * in_p * itm_x + 2 * tm * out_p * itm_x
           + 2 * (in_p * hid_p + hid_p * out_p) * itm_w
           + 4 * (3 * hid_p + out_p) * 4 + 4 * tm * hid_p)
    vmem_limit = min(64 * 1024 * 1024, max(32 * 1024 * 1024, 2 * est))

    kernel = functools.partial(_mlp_kernel, hidden_dim=hidden_dim, eps=eps)

    out2 = pl.pallas_call(
        kernel,
        out_shape=jax.ShapeDtypeStruct((rows_p, out_p), x.dtype),
        grid_spec=pltpu.PrefetchScalarGridSpec(
            num_scalar_prefetch=0,
            grid=grid,
            in_specs=[
                pl.BlockSpec((tm, in_p), lambda i: (i, 0)),        # x rows
                pl.BlockSpec((in_p, hid_p), lambda i: (0, 0)),     # w1 (bf16)
                pl.BlockSpec((1, hid_p), lambda i: (0, 0)),        # b1
                pl.BlockSpec((1, hid_p), lambda i: (0, 0)),        # gamma
                pl.BlockSpec((1, hid_p), lambda i: (0, 0)),        # beta
                pl.BlockSpec((hid_p, out_p), lambda i: (0, 0)),    # w2 (bf16)
                pl.BlockSpec((1, out_p), lambda i: (0, 0)),        # b2
            ],
            out_specs=pl.BlockSpec((tm, out_p), lambda i: (i, 0)),
        ),
        compiler_params=pltpu.CompilerParams(
            dimension_semantics=("parallel",),
            vmem_limit_bytes=int(vmem_limit)),
    )(x2, w1_p, b1_p, g_p, be_p, w2_p, b2_p)

    return out2[:rows, :out_dim].reshape(B, S, out_dim)


def init_params(key, in_dim, hidden_dim, out_dim, dtype=jnp.float32):
    """Deterministic synthetic parameters (shapes match the PyTorch module)."""
    k1, k2, k3, k4, k5, k6 = jax.random.split(key, 6)
    s1 = 1.0 / math.sqrt(in_dim)
    s2 = 1.0 / math.sqrt(hidden_dim)
    w1 = jax.random.uniform(k1, (in_dim, hidden_dim), dtype, -s1, s1)
    b1 = jax.random.uniform(k2, (hidden_dim,), dtype, -s1, s1)
    gamma = jnp.ones((hidden_dim,), dtype) + 0.01 * jax.random.normal(k3, (hidden_dim,), dtype)
    beta = 0.01 * jax.random.normal(k4, (hidden_dim,), dtype)
    w2 = jax.random.uniform(k5, (hidden_dim, out_dim), dtype, -s2, s2)
    b2 = jax.random.uniform(k6, (out_dim,), dtype, -s2, s2)
    return (w1, b1, gamma, beta, w2, b2)


def _reference(x, params, mxu_dtype=jnp.bfloat16):
    """Plain-JAX reference mirroring the kernel's bf16 MXU inputs."""
    w1, b1, gamma, beta, w2, b2 = params
    hp = jax.lax.Precision.HIGHEST
    xq = x.astype(mxu_dtype).astype(jnp.float32)
    w1q = w1.astype(mxu_dtype).astype(jnp.float32)
    w2q = w2.astype(mxu_dtype).astype(jnp.float32)
    h = jnp.einsum("bsd,dh->bsh", xq, w1q, precision=hp) + b1
    h = 0.5 * h * (1.0 + jax.lax.erf(h / math.sqrt(2.0)))
    mean = jnp.mean(h, axis=-1, keepdims=True)
    var = jnp.mean((h - mean) ** 2, axis=-1, keepdims=True)
    h = (h - mean) * jax.lax.rsqrt(var + 1e-5)
    h = h * gamma + beta
    hq = h.astype(mxu_dtype).astype(jnp.float32)
    return jnp.einsum("bsh,ho->bso", hq, w2q, precision=hp) + b2


if __name__ == "__main__":
    key = jax.random.PRNGKey(0)
    kx, kp = jax.random.split(key)

    B, S = 2, 8
    in_dim, hidden_dim, out_dim = 32, 64, 32

    x = jax.random.normal(kx, (B, S, in_dim), jnp.float32)
    params = init_params(kp, in_dim, hidden_dim, out_dim)

    out = image_proj_model_f(x, params)
    out = jax.block_until_ready(out)

    ref = _reference(x, params)
    assert out.shape == (B, S, out_dim)
    assert jnp.allclose(out, ref, atol=2e-3, rtol=2e-3), "mismatch vs reference"

    print("KERNEL_OK")
</pallas_src>

<mosaic_0001>
module attributes {stable_mosaic.version = 11 : i64} {
  func.func @_mlp_kernel(%arg0: i32, %arg1: memref<16x128xf32, #tpu.memory_space<vmem>>, %arg2: memref<128x128xbf16, #tpu.memory_space<vmem>>, %arg3: memref<1x128xf32, #tpu.memory_space<vmem>>, %arg4: memref<1x128xf32, #tpu.memory_space<vmem>>, %arg5: memref<1x128xf32, #tpu.memory_space<vmem>>, %arg6: memref<128x128xbf16, #tpu.memory_space<vmem>>, %arg7: memref<1x128xf32, #tpu.memory_space<vmem>>, %arg8: memref<16x128xf32, #tpu.memory_space<vmem>>) attributes {dimension_semantics = [#tpu.dimension_semantics<parallel>], iteration_bounds = array<i64: 1>, scalar_prefetch = 0 : i64, scratch_operands = 0 : i64, tpu.core_type = #tpu.core_type<tc>, window_params = [{transform_indices = @transform_0, window_bounds = array<i64: 16, 128>}, {pipeline_mode = #tpu.pipeline_mode<synchronous>, transform_indices = @transform_1, window_bounds = array<i64: 128, 128>}, {pipeline_mode = #tpu.pipeline_mode<synchronous>, transform_indices = @transform_2, window_bounds = array<i64: 1, 128>}, {pipeline_mode = #tpu.pipeline_mode<synchronous>, transform_indices = @transform_3, window_bounds = array<i64: 1, 128>}, {pipeline_mode = #tpu.pipeline_mode<synchronous>, transform_indices = @transform_4, window_bounds = array<i64: 1, 128>}, {pipeline_mode = #tpu.pipeline_mode<synchronous>, transform_indices = @transform_5, window_bounds = array<i64: 128, 128>}, {pipeline_mode = #tpu.pipeline_mode<synchronous>, transform_indices = @transform_6, window_bounds = array<i64: 1, 128>}, {transform_indices = @transform_7, window_bounds = array<i64: 16, 128>}]} {
    %c0 = arith.constant 0 : index
    %c0_0 = arith.constant 0 : index
    %0 = vector.load %arg1[%c0, %c0_0] : memref<16x128xf32, #tpu.memory_space<vmem>>, vector<16x128xf32>
    %c0_1 = arith.constant 0 : index
    %c0_2 = arith.constant 0 : index
    %1 = vector.load %arg2[%c0_1, %c0_2] : memref<128x128xbf16, #tpu.memory_space<vmem>>, vector<128x128xbf16>
    %c0_3 = arith.constant 0 : index
    %c0_4 = arith.constant 0 : index
    %2 = vector.load %arg6[%c0_3, %c0_4] : memref<128x128xbf16, #tpu.memory_space<vmem>>, vector<128x128xbf16>
    %3 = arith.truncf %0 : vector<16x128xf32> to vector<16x128xbf16>
    %cst = arith.constant dense<0.000000e+00> : vector<16x128xf32>
    %4 = tpu.matmul %3, %1, %cst {dimension_numbers = #tpu.dot_dimension_numbers<[1], [0], [0], [1], [0, 0, 1, 1], [], []>} : vector<16x128xbf16>, vector<128x128xbf16>, vector<16x128xf32> -> vector<16x128xf32>
    %c0_5 = arith.constant 0 : index
    %c0_6 = arith.constant 0 : index
    %5 = vector.load %arg3[%c0_5, %c0_6] : memref<1x128xf32, #tpu.memory_space<vmem>>, vector<1x128xf32>
    %6 = vector.broadcast %5 : vector<1x128xf32> to vector<16x128xf32>
    %7 = arith.addf %4, %6 : vector<16x128xf32>
    %cst_7 = arith.constant 5.000000e-01 : f32
    %8 = vector.broadcast %cst_7 : f32 to vector<16x128xf32>
    %9 = arith.mulf %8, %7 : vector<16x128xf32>
    %cst_8 = arith.constant 0.707106769 : f32
    %10 = vector.broadcast %cst_8 : f32 to vector<16x128xf32>
    %11 = arith.mulf %7, %10 : vector<16x128xf32>
    %12 = math.erf %11 : vector<16x128xf32>
    %cst_9 = arith.constant 1.000000e+00 : f32
    %13 = vector.broadcast %cst_9 : f32 to vector<16x128xf32>
    %14 = arith.addf %13, %12 : vector<16x128xf32>
    %15 = arith.mulf %9, %14 : vector<16x128xf32>
    %cst_10 = arith.constant dense<0.000000e+00> : vector<16xf32>
    %16 = vector.multi_reduction <add>, %15, %cst_10 [1] : vector<16x128xf32> to vector<16xf32>
    %17 = vector.shape_cast %16 : vector<16xf32> to vector<16x1xf32>
    %cst_11 = arith.constant 1.562500e-02 : f32
    %18 = vector.broadcast %cst_11 : f32 to vector<16x1xf32>
    %19 = arith.mulf %17, %18 : vector<16x1xf32>
    %20 = arith.mulf %15, %15 : vector<16x128xf32>
    %cst_12 = arith.constant dense<0.000000e+00> : vector<16xf32>
    %21 = vector.multi_reduction <add>, %20, %cst_12 [1] : vector<16x128xf32> to vector<16xf32>
    %22 = vector.shape_cast %21 : vector<16xf32> to vector<16x1xf32>
    %cst_13 = arith.constant 1.562500e-02 : f32
    %23 = vector.broadcast %cst_13 : f32 to vector<16x1xf32>
    %24 = arith.mulf %22, %23 : vector<16x1xf32>
    %25 = arith.mulf %19, %19 : vector<16x1xf32>
    %26 = arith.subf %24, %25 : vector<16x1xf32>
    %cst_14 = arith.constant 0.000000e+00 : f32
    %27 = vector.broadcast %cst_14 : f32 to vector<16x1xf32>
    %28 = arith.maximumf %26, %27 : vector<16x1xf32>
    %29 = vector.broadcast %19 : vector<16x1xf32> to vector<16x128xf32>
    %30 = arith.subf %15, %29 : vector<16x128xf32>
    %cst_15 = arith.constant 9.99999974E-6 : f32
    %31 = vector.broadcast %cst_15 : f32 to vector<16x1xf32>
    %32 = arith.addf %28, %31 : vector<16x1xf32>
    %33 = math.rsqrt %32 : vector<16x1xf32>
    %34 = vector.broadcast %33 : vector<16x1xf32> to vector<16x128xf32>
    %35 = arith.mulf %30, %34 : vector<16x128xf32>
    %c0_16 = arith.constant 0 : index
    %c0_17 = arith.constant 0 : index
    %36 = vector.load %arg4[%c0_16, %c0_17] : memref<1x128xf32, #tpu.memory_space<vmem>>, vector<1x128xf32>
    %37 = vector.broadcast %36 : vector<1x128xf32> to vector<16x128xf32>
    %38 = arith.mulf %35, %37 : vector<16x128xf32>
    %c0_18 = arith.constant 0 : index
    %c0_19 = arith.constant 0 : index
    %39 = vector.load %arg5[%c0_18, %c0_19] : memref<1x128xf32, #tpu.memory_space<vmem>>, vector<1x128xf32>
    %40 = vector.broadcast %39 : vector<1x128xf32> to vector<16x128xf32>
    %41 = arith.addf %38, %40 : vector<16x128xf32>
    %42 = arith.truncf %41 : vector<16x128xf32> to vector<16x128xbf16>
    %cst_20 = arith.constant dense<0.000000e+00> : vector<16x128xf32>
    %43 = tpu.matmul %42, %2, %cst_20 {dimension_numbers = #tpu.dot_dimension_numbers<[1], [0], [0], [1], [0, 0, 1, 1], [], []>} : vector<16x128xbf16>, vector<128x128xbf16>, vector<16x128xf32> -> vector<16x128xf32>
    %c0_21 = arith.constant 0 : index
    %c0_22 = arith.constant 0 : index
    %44 = vector.load %arg7[%c0_21, %c0_22] : memref<1x128xf32, #tpu.memory_space<vmem>>, vector<1x128xf32>
    %45 = vector.broadcast %44 : vector<1x128xf32> to vector<16x128xf32>
    %46 = arith.addf %43, %45 : vector<16x128xf32>
    %c0_23 = arith.constant 0 : index
    %c0_24 = arith.constant 0 : index
    %47 = vector.load %arg8[%c0_23, %c0_24] : memref<16x128xf32, #tpu.memory_space<vmem>>, vector<16x128xf32>
    tpu.vector_store %arg8[%c0_23, %c0_24], %46 {strides = array<i32>} : memref<16x128xf32, #tpu.memory_space<vmem>>, vector<16x128xf32>,
    return
  }
  func.func @transform_0(%arg0: i32) -> (i32, i32) {
    %c0_i32 = arith.constant 0 : i32
    %c0_i32_0 = arith.constant 0 : i32
    return %arg0, %c0_i32 : i32, i32
  }
  func.func @transform_1(%arg0: i32) -> (i32, i32) {
    %c0_i32 = arith.constant 0 : i32
    %c0_i32_0 = arith.constant 0 : i32
    %c0_i32_1 = arith.constant 0 : i32
    return %c0_i32, %c0_i32_0 : i32, i32
  }
  func.func @transform_2(%arg0: i32) -> (i32, i32) {
    %c0_i32 = arith.constant 0 : i32
    %c0_i32_0 = arith.constant 0 : i32
    %c0_i32_1 = arith.constant 0 : i32
    return %c0_i32, %c0_i32_0 : i32, i32
  }
  func.func @transform_3(%arg0: i32) -> (i32, i32) {
    %c0_i32 = arith.constant 0 : i32
    %c0_i32_0 = arith.constant 0 : i32
    %c0_i32_1 = arith.constant 0 : i32
    return %c0_i32, %c0_i32_0 : i32, i32
  }
  func.func @transform_4(%arg0: i32) -> (i32, i32) {
    %c0_i32 = arith.constant 0 : i32
    %c0_i32_0 = arith.constant 0 : i32
    %c0_i32_1 = arith.constant 0 : i32
    return %c0_i32, %c0_i32_0 : i32, i32
  }
  func.func @transform_5(%arg0: i32) -> (i32, i32) {
    %c0_i32 = arith.constant 0 : i32
    %c0_i32_0 = arith.constant 0 : i32
    %c0_i32_1 = arith.constant 0 : i32
    return %c0_i32, %c0_i32_0 : i32, i32
  }
  func.func @transform_6(%arg0: i32) -> (i32, i32) {
    %c0_i32 = arith.constant 0 : i32
    %c0_i32_0 = arith.constant 0 : i32
    %c0_i32_1 = arith.constant 0 : i32
    return %c0_i32, %c0_i32_0 : i32, i32
  }
  func.func @transform_7(%arg0: i32) -> (i32, i32) {
    %c0_i32 = arith.constant 0 : i32
    %c0_i32_0 = arith.constant 0 : i32
    return %arg0, %c0_i32 : i32, i32
  }
}

</mosaic_0001>

<llo_original>
// kernel: tpu_custom_call.1
$region0: #{tpu_custom_call.1}
  #allocation0 [shape = 'u32[]', space=smem, size = 0x4, offset = 0x4, fixed_abs, tag = 'smem constant byte address 0x4 - core index']
  #allocation1 [shape = 'u32[144,128]{1,0:T(1,128)}', space=vmem, size = 0x12000, scoped, tag = 'internal scratch']
  %s0 = inlined_call_operand.hbm [shape: f32[16,128], index: 0, kind: input, shape index: {}]
  %s1 = inlined_call_operand.hbm [shape: bf16[128,128], index: 1, kind: input, shape index: {}]
  %s2 = inlined_call_operand.vmem [shape: f32[1,128], index: 2, kind: input, shape index: {}]
  %s3 = inlined_call_operand.vmem [shape: f32[1,128], index: 3, kind: input, shape index: {}]
  %s4 = inlined_call_operand.vmem [shape: f32[1,128], index: 4, kind: input, shape index: {}]
  %s5 = inlined_call_operand.hbm [shape: bf16[128,128], index: 5, kind: input, shape index: {}]
  %s6 = inlined_call_operand.vmem [shape: f32[1,128], index: 6, kind: input, shape index: {}]
  %s7 = inlined_call_operand.hbm [shape: f32[16,128], index: 7, kind: output, shape index: {}]
  %s8 = sld [smem:[#allocation0]]
  $region50: #{tpu_custom_call.1} parent=0
    _
  %s10 = ssub.s32 1, %s8
  %s11 = scalar_select 0, %s10, %s8
  $region1: #{tpu_custom_call.1} parent=0
    #allocation2 [shape = 'u8[8192]{0}', space=vmem, size = 0x2000, scoped, tag = 'input window, operand 0, single buffered']
    #allocation3 [shape = 's32[1]{0}', space=sflag, size = 0x4, scoped, tag = 'scoped memory for tpu_custom_call.1']
    #allocation4 [shape = 's32[1]{0}', space=sflag, size = 0x4, scoped, tag = 'scoped memory for tpu_custom_call.1']
    #allocation5 [shape = 'u8[32768]{0}', space=vmem, size = 0x8000, scoped, tag = 'input window, operand 1, single buffered']
    #allocation6 [shape = 's32[1]{0}', space=sflag, size = 0x4, scoped, tag = 'scoped memory for tpu_custom_call.1']
    #allocation7 [shape = 'u8[32768]{0}', space=vmem, size = 0x8000, scoped, tag = 'input window, operand 5, single buffered']
    #allocation8 [shape = 'u8[8192]{0}', space=vmem, size = 0x2000, scoped, tag = 'output window, operand 0, single buffered']
    %12 = vsyncpa [#allocation3], 0
    %13 = vsyncpa [#allocation6], 0
    %14 = vsyncpa [#allocation4], 0
    // Predicated region
    $region2: #{tpu_custom_call.1} parent=1 // pred_check
      _
    $region3: #{tpu_custom_call.1} parent=1 // pred_check_branch
      %16 = sbr.rel (0) target = $region5
    $region4: #{tpu_custom_call.1} parent=1 // pred_region
      %s18 = ssub.s32 256, 256
      %19 = vsyncadd [#allocation3], %s18
      %s20 = sshll.u32 [#allocation2], 4
      %s21 = int_to_ptr.vmem [resolvable:$true] %s20
      %26 = dma.hbm_to_vmem [thread:$0]  %s0, 256, %s21, [#allocation3], 128, 128, 8
    $region5: #{tpu_custom_call.1} parent=1 // pred_fallthru
      _
    // Predicated region
    $region6: #{tpu_custom_call.1} parent=1 // pred_check
      _
    $region7: #{tpu_custom_call.1} parent=1 // pred_check_branch
      %28 = sbr.rel (0) target = $region9
    $region8: #{tpu_custom_call.1} parent=1 // pred_region
      %s30 = ssub.s32 1024, 1024
      %31 = vsyncadd [#allocation6], %s30
      %s32 = sshll.u32 [#allocation5], 4
      %s33 = int_to_ptr.vmem [resolvable:$true] %s32
      %38 = dma.hbm_to_vmem [thread:$0]  %s1, 1024, %s33, [#allocation6], 64, 64, 4
    $region9: #{tpu_custom_call.1} parent=1 // pred_fallthru
      _
    // Predicated region
    $region10: #{tpu_custom_call.1} parent=1 // pred_check
      _
    $region11: #{tpu_custom_call.1} parent=1 // pred_check_branch
      %40 = sbr.rel (0) target = $region13
    $region12: #{tpu_custom_call.1} parent=1 // pred_region
      _
    $region13: #{tpu_custom_call.1} parent=1 // pred_fallthru
      _
    // Predicated region
    $region14: #{tpu_custom_call.1} parent=1 // pred_check
      _
    $region15: #{tpu_custom_call.1} parent=1 // pred_check_branch
      %42 = sbr.rel (0) target = $region17
    $region16: #{tpu_custom_call.1} parent=1 // pred_region
      _
    $region17: #{tpu_custom_call.1} parent=1 // pred_fallthru
      _
    // Predicated region
    $region18: #{tpu_custom_call.1} parent=1 // pred_check
      _
    $region19: #{tpu_custom_call.1} parent=1 // pred_check_branch
      %44 = sbr.rel (0) target = $region21
    $region20: #{tpu_custom_call.1} parent=1 // pred_region
      _
    $region21: #{tpu_custom_call.1} parent=1 // pred_fallthru
      _
    // Predicated region
    $region22: #{tpu_custom_call.1} parent=1 // pred_check
      _
    $region23: #{tpu_custom_call.1} parent=1 // pred_check_branch
      %46 = sbr.rel (0) target = $region25
    $region24: #{tpu_custom_call.1} parent=1 // pred_region
      %s48 = ssub.s32 1024, 1024
      %49 = vsyncadd [#allocation6], %s48
      %s50 = sshll.u32 [#allocation7], 4
      %s51 = int_to_ptr.vmem [resolvable:$true] %s50
      %56 = dma.hbm_to_vmem [thread:$0]  %s5, 1024, %s51, [#allocation6], 64, 64, 4
    $region25: #{tpu_custom_call.1} parent=1 // pred_fallthru
      _
    // Predicated region
    $region26: #{tpu_custom_call.1} parent=1 // pred_check
      _
    $region27: #{tpu_custom_call.1} parent=1 // pred_check_branch
      %58 = sbr.rel (0) target = $region29
    $region28: #{tpu_custom_call.1} parent=1 // pred_region
      _
    $region29: #{tpu_custom_call.1} parent=1 // pred_fallthru
      _
    // Predicated region
    $region30: #{tpu_custom_call.1} parent=1 // pred_check
      _
    $region31: #{tpu_custom_call.1} parent=1 // pred_check_branch
      %60 = sbr.rel (0) target = $region33
    $region32: #{tpu_custom_call.1} parent=1 // pred_region
      %61 = dma.done [#allocation3], 256
    $region33: #{tpu_custom_call.1} parent=1 // pred_fallthru
      _
    // Predicated region
    $region34: #{tpu_custom_call.1} parent=1 // pred_check
      _
    $region35: #{tpu_custom_call.1} parent=1 // pred_check_branch
      %63 = sbr.rel (0) target = $region37
    $region36: #{tpu_custom_call.1} parent=1 // pred_region
      %64 = dma.done [#allocation6], 1024
    $region37: #{tpu_custom_call.1} parent=1 // pred_fallthru
      _
    // Predicated region
    $region38: #{tpu_custom_call.1} parent=1 // pred_check
      _
    $region39: #{tpu_custom_call.1} parent=1 // pred_check_branch
      %66 = sbr.rel (0) target = $region41
    $region40: #{tpu_custom_call.1} parent=1 // pred_region
      %67 = dma.done [#allocation6], 1024
    $region41: #{tpu_custom_call.1} parent=1 // pred_fallthru
      _
    %v69 = vld [vmem:[#allocation2] sm:$0xff]
    %v70 = vld [vmem:[#allocation2 + $0x8] sm:$0xff]
    %v71 = vld [vmem:[#allocation5] sm:$0xf]
    %v72 = vld [vmem:[#allocation5 + $0x4] sm:$0xf]
    %v73 = vld [vmem:[#allocation5 + $0x8] sm:$0xf]
    %v74 = vld [vmem:[#allocation5 + $0xc] sm:$0xf]
    %v75 = vld [vmem:[#allocation5 + $0x10] sm:$0xf]
    %v76 = vld [vmem:[#allocation5 + $0x14] sm:$0xf]
    %v77 = vld [vmem:[#allocation5 + $0x18] sm:$0xf]
    %v78 = vld [vmem:[#allocation5 + $0x1c] sm:$0xf]
    %v79 = vld [vmem:[#allocation5 + $0x20] sm:$0xf]
    %v80 = vld [vmem:[#allocation5 + $0x24] sm:$0xf]
    %v81 = vld [vmem:[#allocation5 + $0x28] sm:$0xf]
    %v82 = vld [vmem:[#allocation5 + $0x2c] sm:$0xf]
    %v83 = vld [vmem:[#allocation5 + $0x30] sm:$0xf]
    %v84 = vld [vmem:[#allocation5 + $0x34] sm:$0xf]
    %v85 = vld [vmem:[#allocation5 + $0x38] sm:$0xf]
    %v86 = vld [vmem:[#allocation5 + $0x3c] sm:$0xf]
    %v87 = vld [vmem:[#allocation7] sm:$0xf]
    %v88 = vld [vmem:[#allocation7 + $0x4] sm:$0xf]
    %v89 = vld [vmem:[#allocation7 + $0x8] sm:$0xf]
    %v90 = vld [vmem:[#allocation7 + $0xc] sm:$0xf]
    %v91 = vld [vmem:[#allocation7 + $0x10] sm:$0xf]
    %v92 = vld [vmem:[#allocation7 + $0x14] sm:$0xf]
    %v93 = vld [vmem:[#allocation7 + $0x18] sm:$0xf]
    %v94 = vld [vmem:[#allocation7 + $0x1c] sm:$0xf]
    %v95 = vld [vmem:[#allocation7 + $0x20] sm:$0xf]
    %v96 = vld [vmem:[#allocation7 + $0x24] sm:$0xf]
    %v97 = vld [vmem:[#allocation7 + $0x28] sm:$0xf]
    %v98 = vld [vmem:[#allocation7 + $0x2c] sm:$0xf]
    %v99 = vld [vmem:[#allocation7 + $0x30] sm:$0xf]
    %v100 = vld [vmem:[#allocation7 + $0x34] sm:$0xf]
    %v101 = vld [vmem:[#allocation7 + $0x38] sm:$0xf]
    %v102 = vld [vmem:[#allocation7 + $0x3c] sm:$0xf]
    %v103 = vpack.c.bf16 %v70, %v69
    %v104 = vld [vmem:[%s2] sm:$0x1]
    %v106 = vlaneseq
    %v107 = vshrl.u32 %v106, 7
    %v108 = vsub.s32 0, %v107
    %v109 = vrot.slane %v104, %v108
    %v127 = vunpack.c.l.b16 %v71
    %v128 = vunpack.c.l.b16 %v72
    %v129 = vunpack.c.l.b16 %v73
    %v130 = vunpack.c.l.b16 %v74
    %v131 = vunpack.c.l.b16 %v75
    %v132 = vunpack.c.l.b16 %v76
    %v133 = vunpack.c.l.b16 %v77
    %v134 = vunpack.c.l.b16 %v78
    %v135 = vunpack.c.l.b16 %v79
    %v136 = vunpack.c.l.b16 %v80
    %v137 = vunpack.c.l.b16 %v81
    %v138 = vunpack.c.l.b16 %v82
    %v139 = vunpack.c.l.b16 %v83
    %v140 = vunpack.c.l.b16 %v84
    %v141 = vunpack.c.l.b16 %v85
    %v142 = vunpack.c.l.b16 %v86
    %v143 = vpack.c.b16 %v128, %v127
    %v144 = vpack.c.b16 %v130, %v129
    %v145 = vpack.c.b16 %v132, %v131
    %v146 = vpack.c.b16 %v134, %v133
    %v147 = vpack.c.b16 %v136, %v135
    %v148 = vpack.c.b16 %v138, %v137
    %v149 = vpack.c.b16 %v140, %v139
    %v150 = vpack.c.b16 %v142, %v141
    %159 = vmatprep.subr.bf16.mxu0 0
    %160 = vmatpush1.bf16.msra.mxu0 %v143
    %161 = vmatprep.subr.bf16.mxu0 0
    %162 = vmatpush1.bf16.msra.mxu0 %v144
    %163 = vmatprep.subr.bf16.mxu0 0
    %164 = vmatpush1.bf16.msra.mxu0 %v145
    %165 = vmatprep.subr.bf16.mxu0 0
    %166 = vmatpush1.bf16.msra.mxu0 %v146
    %167 = vmatprep.subr.bf16.mxu0 0
    %168 = vmatpush1.bf16.msra.mxu0 %v147
    %169 = vmatprep.subr.bf16.mxu0 0
    %170 = vmatpush1.bf16.msra.mxu0 %v148
    %171 = vmatprep.subr.bf16.mxu0 0
    %172 = vmatpush1.bf16.msra.mxu0 %v149
    %173 = vmatprep.subr.bf16.mxu0 0
    %174 = vmatpush1.bf16.msra.mxu0 %v150
    %175 = vmatprep.subr.bf16.mxu0 0
    %176 = vmatpush1.bf16.msra.mxu0 0
    %177 = vmatprep.subr.bf16.mxu0 0
    %178 = vmatpush1.bf16.msra.mxu0 0
    %179 = vmatprep.subr.bf16.mxu0 0
    %180 = vmatpush1.bf16.msra.mxu0 0
    %181 = vmatprep.subr.bf16.mxu0 0
    %182 = vmatpush1.bf16.msra.mxu0 0
    %183 = vmatprep.subr.bf16.mxu0 0
    %184 = vmatpush1.bf16.msra.mxu0 0
    %185 = vmatprep.subr.bf16.mxu0 0
    %186 = vmatpush1.bf16.msra.mxu0 0
    %187 = vmatprep.subr.bf16.mxu0 0
    %188 = vmatpush1.bf16.msra.mxu0 0
    %189 = vmatprep.subr.bf16.mxu0 0
    %190 = vmatpush1.bf16.msra.mxu0 0
    %191 = vmatprep.mubr.bf16.mxu0 0
    %192 = vmatmul.mubr.bf16.gmra.mrb[0].mxu0 %v103
    %v193 = vpop.f32.mrb[0].mxu0
    %v194 = vadd.f32 %v109, %v193
    %v195 = vpop.f32.mrb[0].mxu0
    %v196 = vpop.f32.mrb[0].mxu0
    %v197 = vadd.f32 %v109, %v196
    %v198 = vpop.f32.mrb[0].mxu0
    %199 = vdwg.mxu0
    %v200 = vmul.f32 %v194, 0.5
    %v201 = vmul.f32 %v197, 0.5
    %v202 = vmul.f32 %v194, 0.70710677
    %v203 = vmul.f32 %v197, 0.70710677
    %v204 = verf.f32.pop %v202
    %v205 = verf.f32.pop %v203
    %v206 = vadd.f32 %v204, 1.0
    %v207 = vadd.f32 %v205, 1.0
    %v208 = vmul.f32 %v200, %v206
    %v209 = vmul.f32 %v201, %v207
    %210 = vadd.xlane.f32.xlu0 %v208
    %v211 = vpop.xlane.xlu0 %210
    %212 = vadd.xlane.f32.xlu0 %v209
    %v213 = vpop.xlane.xlu0 %212
    %v214 = vmul.f32 %v211, 0.015625
    %v215 = vmul.f32 %v213, 0.015625
    %v216 = vmul.f32 %v208, %v208
    %v217 = vmul.f32 %v209, %v209
    %218 = vadd.xlane.f32.xlu0 %v216
    %v219 = vpop.xlane.xlu0 %218
    %220 = vadd.xlane.f32.xlu0 %v217
    %v221 = vpop.xlane.xlu0 %220
    %v222 = vmul.f32 %v219, 0.015625
    %v223 = vmul.f32 %v221, 0.015625
    %v224 = vmul.f32 %v214, %v214
    %v225 = vmul.f32 %v215, %v215
    %v226 = vsub.f32 %v222, %v224
    %v227 = vsub.f32 %v223, %v225
    %v228 = vmax.f32 %v226, 0.0
    %v229 = vmax.f32 %v227, 0.0
    %v230 = vsub.f32 %v208, %v214
    %v231 = vsub.f32 %v209, %v215
    %v232 = vadd.f32 %v228, 1e-05
    %v233 = vadd.f32 %v229, 1e-05
    %v234 = vrsqrt.pop %v232
    %v235 = vrsqrt.pop %v233
    %v236 = vmul.f32 %v230, %v234
    %v237 = vmul.f32 %v231, %v235
    %v238 = vld [vmem:[%s3] sm:$0x1]
    %v240 = vlaneseq
    %v241 = vshrl.u32 %v240, 7
    %v242 = vsub.s32 0, %v241
    %v243 = vrot.slane %v238, %v242
    %v245 = vmul.f32 %v236, %v243
    %v246 = vmul.f32 %v237, %v243
    %v247 = vld [vmem:[%s4] sm:$0x1]
    %v249 = vlaneseq
    %v250 = vshrl.u32 %v249, 7
    %v251 = vsub.s32 0, %v250
    %v252 = vrot.slane %v247, %v251
    %v254 = vadd.f32 %v245, %v252
    %v255 = vadd.f32 %v246, %v252
    %v256 = vpack.c.bf16 %v255, %v254
    %v257 = vld [vmem:[%s6] sm:$0x1]
    %v259 = vlaneseq
    %v260 = vshrl.u32 %v259, 7
    %v261 = vsub.s32 0, %v260
    %v262 = vrot.slane %v257, %v261
    %v280 = vunpack.c.l.b16 %v87
    %v281 = vunpack.c.l.b16 %v88
    %v282 = vunpack.c.l.b16 %v89
    %v283 = vunpack.c.l.b16 %v90
    %v284 = vunpack.c.l.b16 %v91
    %v285 = vunpack.c.l.b16 %v92
    %v286 = vunpack.c.l.b16 %v93
    %v287 = vunpack.c.l.b16 %v94
    %v288 = vunpack.c.l.b16 %v95
    %v289 = vunpack.c.l.b16 %v96
    %v290 = vunpack.c.l.b16 %v97
    %v291 = vunpack.c.l.b16 %v98
    %v292 = vunpack.c.l.b16 %v99
    %v293 = vunpack.c.l.b16 %v100
    %v294 = vunpack.c.l.b16 %v101
    %v295 = vunpack.c.l.b16 %v102
    %v296 = vpack.c.b16 %v281, %v280
    %v297 = vpack.c.b16 %v283, %v282
    %v298 = vpack.c.b16 %v285, %v284
    %v299 = vpack.c.b16 %v287, %v286
    %v300 = vpack.c.b16 %v289, %v288
    %v301 = vpack.c.b16 %v291, %v290
    %v302 = vpack.c.b16 %v293, %v292
    %v303 = vpack.c.b16 %v295, %v294
    %312 = vmatprep.subr.bf16.mxu0 0
    %313 = vmatpush1.bf16.msra.mxu0 %v296
    %314 = vmatprep.subr.bf16.mxu0 0
    %315 = vmatpush1.bf16.msra.mxu0 %v297
    %316 = vmatprep.subr.bf16.mxu0 0
    %317 = vmatpush1.bf16.msra.mxu0 %v298
    %318 = vmatprep.subr.bf16.mxu0 0
    %319 = vmatpush1.bf16.msra.mxu0 %v299
    %320 = vmatprep.subr.bf16.mxu0 0
    %321 = vmatpush1.bf16.msra.mxu0 %v300
    %322 = vmatprep.subr.bf16.mxu0 0
    %323 = vmatpush1.bf16.msra.mxu0 %v301
    %324 = vmatprep.subr.bf16.mxu0 0
    %325 = vmatpush1.bf16.msra.mxu0 %v302
    %326 = vmatprep.subr.bf16.mxu0 0
    %327 = vmatpush1.bf16.msra.mxu0 %v303
    %328 = vmatprep.subr.bf16.mxu0 0
    %329 = vmatpush1.bf16.msra.mxu0 0
    %330 = vmatprep.subr.bf16.mxu0 0
    %331 = vmatpush1.bf16.msra.mxu0 0
    %332 = vmatprep.subr.bf16.mxu0 0
    %333 = vmatpush1.bf16.msra.mxu0 0
    %334 = vmatprep.subr.bf16.mxu0 0
    %335 = vmatpush1.bf16.msra.mxu0 0
    %336 = vmatprep.subr.bf16.mxu0 0
    %337 = vmatpush1.bf16.msra.mxu0 0
    %338 = vmatprep.subr.bf16.mxu0 0
    %339 = vmatpush1.bf16.msra.mxu0 0
    %340 = vmatprep.subr.bf16.mxu0 0
    %341 = vmatpush1.bf16.msra.mxu0 0
    %342 = vmatprep.subr.bf16.mxu0 0
    %343 = vmatpush1.bf16.msra.mxu0 0
    %344 = vmatprep.mubr.bf16.mxu0 0
    %345 = vmatmul.mubr.bf16.gmra.mrb[0].mxu0 %v256
    %v346 = vpop.f32.mrb[0].mxu0
    %v347 = vadd.f32 %v262, %v346
    %v348 = vpop.f32.mrb[0].mxu0
    %v349 = vpop.f32.mrb[0].mxu0
    %v350 = vadd.f32 %v262, %v349
    %v351 = vpop.f32.mrb[0].mxu0
    %352 = vdwg.mxu0
    %353 = vst [vmem:[#allocation8] sm:$0xff] %v347
    %354 = vst [vmem:[#allocation8 + $0x8] sm:$0xff] %v350
    // Predicated region
    $region42: #{tpu_custom_call.1} parent=1 // pred_check
      _
    $region43: #{tpu_custom_call.1} parent=1 // pred_check_branch
      %356 = sbr.rel (0) target = $region45
    $region44: #{tpu_custom_call.1} parent=1 // pred_region
      %s358 = ssub.s32 256, 256
      %359 = vsyncadd [#allocation4], %s358
      %s360 = sshll.u32 [#allocation8], 4
      %s361 = int_to_ptr.vmem [resolvable:$true] %s360
      %366 = dma.vmem_to_hbm [thread:$0]  %s361, 256, %s7, [#allocation4], 128, 128, 8
    $region45: #{tpu_custom_call.1} parent=1 // pred_fallthru
      _
    // Predicated region
    $region46: #{tpu_custom_call.1} parent=1 // pred_check
      _
    $region47: #{tpu_custom_call.1} parent=1 // pred_check_branch
      %368 = sbr.rel (0) target = $region49
    $region48: #{tpu_custom_call.1} parent=1 // pred_region
      %369 = dma.done [#allocation4], 256
    $region49: #{tpu_custom_call.1} parent=1 // pred_fallthru
      _
    %370 = vsyncpa [#allocation3], 1
    %371 = vsyncpa [#allocation6], 1
    %372 = vsyncpa [#allocation4], 1

</llo_original>
